<compile_context>
chip_gen: v5e
topology: v5e:2x2
jax: 0.10.0
libtpu: 0.0.40
codegen_flags: <defaults>
</compile_context>

<pallas_src>
import numpy as np
import jax
import jax.numpy as jnp
from jax import lax
from jax.experimental import pallas as pl
from jax.experimental.pallas import tpu as pltpu

HP = jax.lax.Precision.HIGHEST


# ----------------------------------------------------------------------------
# Pallas kernel: one chunk of time steps per grid iteration, state carried in
# a (5, B, lod) VMEM scratch across chunks and in vregs within a chunk.
# ----------------------------------------------------------------------------
def rkn_chunk_kernel(
    obsm_ref, obsc_ref, st0_ref,
    wcou_ref, wcol_ref, bco_ref,
    basis_ref, rrep_ref, rsum_ref, tcu_ref, tcl_ref,
    out_ref,
    state_sc,
):
    _, B, lod = st0_ref.shape
    chunk = obsm_ref.shape[0] // B
    BLK = rrep_ref.shape[1]                      # 128-lane padded block width

    dot = lambda a, b: jnp.dot(a, b, preferred_element_type=jnp.float32)

    @pl.when(pl.program_id(0) == 0)
    def _():
        state_sc[...] = st0_ref[...]

    # Constants: loaded once per chunk, reused across the unrolled inner loop.
    wcou = wcou_ref[...]
    wcol = wcol_ref[...]
    bco = bco_ref[...]
    basis = basis_ref[...]
    rrep = rrep_ref[...]
    rsum = rsum_ref[...]
    tcu = tcu_ref[...]                           # elup1(log_trans_covar), upper
    tcl = tcl_ref[...]                           # elup1(log_trans_covar), lower

    def step(s, carry):
        mu, ml, cu, cl, cs = carry               # each (B, lod), f32, in vregs
        row = pl.multiple_of(s * B, 8)
        om = obsm_ref[pl.ds(row, B), :]          # obs mean (already ELU + 1)
        oc = obsc_ref[pl.ds(row, B), :]          # obs covar (already L1-normalized)

        # --- coefficient net: Linear(2*lod -> nb) + softmax (weights pre-split) ---
        logits = dot(mu, wcou) + dot(ml, wcol) + bco
        logits = logits - jnp.max(logits, axis=-1, keepdims=True)
        el = jnp.exp(logits)
        coeff = el / jnp.sum(el, axis=-1, keepdims=True)        # exact division

        # --- transition blocks, lane-flattened, 128-lane aligned & zero padded ----
        tcat = dot(coeff, basis)                                 # (B, 4*BLK)
        t11 = tcat[:, 0 * BLK:1 * BLK]
        t12 = tcat[:, 1 * BLK:2 * BLK]
        t21 = tcat[:, 2 * BLK:3 * BLK]
        t22 = tcat[:, 3 * BLK:4 * BLK]

        # --- replicate state comps along lanes (lane i*lod+j <- comp[:, j]) via a
        #     single constant matmul on the sublane-stacked components --------------
        comps = jnp.concatenate([mu, ml, cu, cl, cs], axis=0)   # (5B, lod)
        rep = dot(comps, rrep)                                  # (5B, BLK)
        mu_r = rep[0 * B:1 * B]
        ml_r = rep[1 * B:2 * B]
        cu_r = rep[2 * B:3 * B]
        cl_r = rep[3 * B:4 * B]
        cs_r = rep[4 * B:5 * B]

        # --- predict: elementwise products in the padded (B, BLK) layout ----------
        p0 = t11 * mu_r + t12 * ml_r                              # new mean upper
        p1 = t21 * mu_r + t22 * ml_r                              # new mean lower
        p2 = t11 * t11 * cu_r + 2.0 * t11 * t12 * cs_r + t12 * t12 * cl_r
        p3 = t21 * t21 * cu_r + 2.0 * t21 * t22 * cs_r + t22 * t22 * cl_r
        p4 = t21 * t11 * cu_r + (t22 * t11 + t21 * t12) * cs_r + t22 * t12 * cl_r

        # --- block-sum over j (groups of lod lanes) via one constant matmul -------
        pstack = jnp.concatenate([p0, p1, p2, p3, p4], axis=0)   # (5B, BLK)
        pri = dot(pstack, rsum)                                  # (5B, lod)
        pm_u = pri[0 * B:1 * B]
        pm_l = pri[1 * B:2 * B]
        pcu = pri[2 * B:3 * B] + tcu
        pcl = pri[3 * B:4 * B] + tcl
        pcs = pri[4 * B:5 * B]

        # --- Kalman update: EXACT reciprocal (error compounds through recurrence) --
        inv_den = 1.0 / (pcu + oc)
        q_u = pcu * inv_den
        q_l = pcs * inv_den
        res = om - pm_u
        nmu = pm_u + q_u * res
        nml = pm_l + q_l * res
        cf = 1.0 - q_u
        ncu = cf * pcu
        ncl = pcl - q_l * pcs
        ncs = cf * pcs

        # packed (B, 5*lod) per-step output (store is off the recurrence path)
        out_ref[pl.ds(row, B), :] = jnp.concatenate(
            [nmu, nml, ncu, ncl, ncs], axis=-1)
        return (nmu, nml, ncu, ncl, ncs)

    carry0 = (state_sc[0], state_sc[1], state_sc[2], state_sc[3], state_sc[4])
    mu, ml, cu, cl, cs = lax.fori_loop(0, chunk, step, carry0,
                                       unroll=min(chunk, 8))
    state_sc[0] = mu
    state_sc[1] = ml
    state_sc[2] = cu
    state_sc[3] = cl
    state_sc[4] = cs


# ----------------------------------------------------------------------------
# One-time parameter preparation (banding, weight fusion, padded layouts).
# ----------------------------------------------------------------------------
def prepare_rkn_params(params):
    nb, lod, _ = np.shape(params["tm11"])
    bw = params["bandwidth"]
    L2 = lod * lod
    BLK = ((L2 + 127) // 128) * 128              # 128-lane padded block width

    band = lambda m: jnp.triu(m, -bw) - jnp.triu(m, bw)
    basis_pad = jnp.zeros((nb, 4 * BLK), jnp.float32)
    for c, key in enumerate(("tm11", "tm12", "tm21", "tm22")):
        blk = band(params[key].astype(jnp.float32)).reshape(nb, L2)
        basis_pad = basis_pad.at[:, c * BLK:c * BLK + L2].set(blk)

    # constant 0/1 matrices: lane-replication and block-sum (padding lanes zero)
    rrep = np.zeros((lod, BLK), np.float32)      # rep[b, i*lod+j] = v[b, j]
    rsum = np.zeros((BLK, lod), np.float32)      # out[b, i] = sum_j p[b, i*lod+j]
    for i in range(lod):
        for j in range(lod):
            rrep[j, i * lod + j] = 1.0
            rsum[i * lod + j, i] = 1.0

    elup1 = lambda z: jnp.where(z > 0, z + 1.0, jnp.exp(z))
    tc = elup1(params["log_trans_covar"].astype(jnp.float32)).reshape(1, 2 * lod)

    Wco = params["Wco"].astype(jnp.float32)
    return {
        # observation pre-pass weights (mean_norm folded into dense_mean)
        "Wom": jnp.dot(params["Wdm"], params["Wmn"], precision=HP),
        "bom": jnp.dot(params["bdm"], params["Wmn"], precision=HP) + params["bmn"],
        "Wdc": params["Wdc"].astype(jnp.float32),
        "bdc": params["bdc"].astype(jnp.float32),
        # coefficient net, split into mean-upper / mean-lower halves
        "Wco_u": Wco[:lod], "Wco_l": Wco[lod:], "bco": params["bco"].astype(jnp.float32),
        # banded transition basis, lane-flattened, 128-lane padded blocks
        "basis": basis_pad,
        "rrep": jnp.asarray(rrep), "rsum": jnp.asarray(rsum),
        # transition covariance already through ELU()+1
        "tcu": tc[:, :lod], "tcl": tc[:, lod:],
    }


# ----------------------------------------------------------------------------
# Sequence wrapper: obs pre-pass in XLA, then one pallas_call over time chunks.
# ----------------------------------------------------------------------------
def _rkn_sequence_impl(x_seq, state0, prep, chunk=8):
    T, B, org_dim = x_seq.shape
    lod = prep["rsum"].shape[1]
    assert B % 8 == 0, "batch must be a multiple of 8 (sublane tile)"
    chunk = max(1, min(int(chunk), T))
    n_chunks = (T + chunk - 1) // chunk
    T_pad = n_chunks * chunk

    # --- observation branch (x-only), hoisted out of the serial recurrence --------
    x2d = x_seq.reshape(T * B, org_dim)
    hm = jnp.dot(x2d, prep["Wom"], precision=HP) + prep["bom"]
    obs_mean = jnp.where(hm > 0, hm + 1.0, jnp.exp(hm))          # ELU + 1
    oc = jnp.dot(x2d, prep["Wdc"], precision=HP) + prep["bdc"]
    oc = oc.reshape(T, B, lod)
    l1 = jnp.sum(jnp.abs(oc), axis=(1, 2), keepdims=True)        # per-step global L1
    obs_covar = oc / l1
    obs_mean = obs_mean.reshape(T, B, lod)

    if T_pad != T:
        pad = ((0, T_pad - T), (0, 0), (0, 0))
        obs_mean = jnp.pad(obs_mean, pad)
        obs_covar = jnp.pad(obs_covar, pad)
    obs_mean = obs_mean.reshape(T_pad * B, lod)
    obs_covar = obs_covar.reshape(T_pad * B, lod)

    # packed (B, 5*lod) -> sublane-major (5, B, lod) initial state
    state0_r = state0.reshape(B, 5, lod).transpose(1, 0, 2)

    def const_spec(a):
        return pl.BlockSpec(a.shape, lambda c, n=a.ndim: (0,) * n)

    out = pl.pallas_call(
        rkn_chunk_kernel,
        out_shape=jax.ShapeDtypeStruct((T_pad * B, 5 * lod), jnp.float32),
        grid=(n_chunks,),
        in_specs=[
            pl.BlockSpec((chunk * B, lod), lambda c: (c, 0)),    # obs mean slab
            pl.BlockSpec((chunk * B, lod), lambda c: (c, 0)),    # obs covar slab
            const_spec(state0_r),
            const_spec(prep["Wco_u"]), const_spec(prep["Wco_l"]), const_spec(prep["bco"]),
            const_spec(prep["basis"]),
            const_spec(prep["rrep"]), const_spec(prep["rsum"]),
            const_spec(prep["tcu"]), const_spec(prep["tcl"]),
        ],
        out_specs=pl.BlockSpec((chunk * B, 5 * lod), lambda c: (c, 0)),
        scratch_shapes=[pltpu.VMEM((5, B, lod), jnp.float32)],
        compiler_params=pltpu.CompilerParams(
            dimension_semantics=("arbitrary",),                  # serial recurrence
        ),
    )(obs_mean, obs_covar, state0_r,
      prep["Wco_u"], prep["Wco_l"], prep["bco"],
      prep["basis"], prep["rrep"], prep["rsum"], prep["tcu"], prep["tcl"])

    return out.reshape(T_pad, B, 5 * lod)[:T]


rkn_sequence_forward = jax.jit(_rkn_sequence_impl, static_argnames=("chunk",))


def rkn_single_cell_forward(x, state, prep):
    """Single-step forward matching the PyTorch module's forward(input, state)."""
    packed = rkn_sequence_forward(x[None], state, prep)[0]
    lod = state.shape[1] // 5
    return packed[:, :2 * lod], packed


# ----------------------------------------------------------------------------
# Pure-JAX reference (mirrors the PyTorch module semantics, f32 matmuls).
# ----------------------------------------------------------------------------
def _band(t, bw):
    return jnp.triu(t, -bw) - jnp.triu(t, bw)


def rkn_reference(x, state, params):
    lod = state.shape[1] // 5
    bw = params["bandwidth"]
    elu = lambda z: jnp.where(z > 0, z, jnp.exp(z) - 1.0)

    obs_mean = elu(jnp.dot(jnp.dot(x, params["Wdm"], precision=HP) + params["bdm"],
                           params["Wmn"], precision=HP) + params["bmn"]) + 1.0
    oc = jnp.dot(x, params["Wdc"], precision=HP) + params["bdc"]
    obs_covar = oc / jnp.sum(jnp.abs(oc))

    mean = state[:, :2 * lod]
    cu = state[:, 2 * lod:3 * lod]
    cl = state[:, 3 * lod:4 * lod]
    cs = state[:, 4 * lod:]

    coeff = jax.nn.softmax(
        jnp.dot(mean, params["Wco"], precision=HP) + params["bco"], axis=-1)
    t11 = _band(params["tm11"], bw)
    t12 = _band(params["tm12"], bw)
    t21 = _band(params["tm21"], bw)
    t22 = _band(params["tm22"], bw)
    basis = jnp.concatenate([jnp.concatenate([t11, t12], -1),
                             jnp.concatenate([t21, t22], -1)], -2)
    T = jnp.einsum("bk,kij->bij", coeff, basis, precision=HP)
    new_mean = jnp.einsum("bij,bj->bi", T, mean, precision=HP)

    b11 = T[:, :lod, :lod]
    b12 = T[:, :lod, lod:]
    b21 = T[:, lod:, :lod]
    b22 = T[:, lod:, lod:]
    tc = elu(params["log_trans_covar"]) + 1.0

    dadat = lambda A, d: jnp.sum(A * A * d[:, None, :], axis=2)
    dadbt = lambda A, d, Bm: jnp.sum(A * Bm * d[:, None, :], axis=2)

    pcu = dadat(b11, cu) + 2 * dadbt(b11, cs, b12) + dadat(b12, cl) + tc[:lod]
    pcl = dadat(b21, cu) + 2 * dadbt(b21, cs, b22) + dadat(b22, cl) + tc[lod:]
    pcs = (dadbt(b21, cu, b11) + dadbt(b22, cs, b11)
           + dadbt(b21, cs, b12) + dadbt(b22, cl, b12))

    denom = pcu + obs_covar
    q_u = pcu / denom
    q_l = pcs / denom
    res = obs_mean - new_mean[:, :lod]
    upd_mean = new_mean + jnp.concatenate([q_u * res, q_l * res], -1)
    cf = 1 - q_u
    packed = jnp.concatenate([upd_mean, cf * pcu, pcl - q_l * pcs, cf * pcs], 1)
    return upd_mean, packed


def rkn_reference_sequence(x_seq, state0, params):
    outs = []
    state = state0
    for t in range(x_seq.shape[0]):
        _, state = rkn_reference(x_seq[t], state, params)
        outs.append(state)
    return jnp.stack(outs, axis=0)


# ----------------------------------------------------------------------------
if __name__ == "__main__":
    B, org_dim = 8, 16
    lod, nb, bw = 8, 8, 2
    lsd = 2 * lod
    T = 8
    initial_trans_covar = 1.0        # elup1_inv(1.0) = 0.0 (well-conditioned demo)

    key = jax.random.PRNGKey(0)
    ks = jax.random.split(key, 16)
    nrm = lambda k, s, sc=0.3: sc * jax.random.normal(k, s, jnp.float32)

    elup1_inv = lambda v: float(np.log(v)) if v < 1.0 else float(v - 1.0)
    eye = np.tile(np.eye(lod, dtype=np.float32)[None], (nb, 1, 1))
    params = {
        "Wdm": nrm(ks[0], (org_dim, lod)),
        "bdm": nrm(ks[1], (1, lod), 0.1),
        "Wdc": nrm(ks[2], (org_dim, lod)),
        "bdc": nrm(ks[3], (1, lod), 0.1),
        "Wmn": nrm(ks[4], (lod, lod)),
        "bmn": nrm(ks[5], (1, lod), 0.1),
        "Wco": nrm(ks[6], (lsd, nb)),
        "bco": nrm(ks[7], (1, nb), 0.1),
        # module init (identity-based) + small deterministic perturbation
        "tm11": jnp.asarray(eye) + nrm(ks[8], (nb, lod, lod), 0.05),
        "tm12": jnp.asarray(0.2 * eye) + nrm(ks[9], (nb, lod, lod), 0.05),
        "tm21": jnp.asarray(-0.2 * eye) + nrm(ks[10], (nb, lod, lod), 0.05),
        "tm22": jnp.asarray(eye) + nrm(ks[11], (nb, lod, lod), 0.05),
        "log_trans_covar": jnp.full((lsd,), elup1_inv(initial_trans_covar),
                                    jnp.float32),
        "bandwidth": bw,
    }

    x_seq = 0.5 * jax.random.normal(ks[12], (T, B, org_dim), jnp.float32)
    state_mean0 = 0.5 * jax.random.normal(ks[13], (B, lsd), jnp.float32)
    state_covar0 = jax.random.uniform(ks[14], (B, 3 * lod), jnp.float32,
                                      minval=0.5, maxval=1.5)
    state0 = jnp.concatenate([state_mean0, state_covar0], axis=1)

    prep = prepare_rkn_params(params)

    # ---- single-cell forward (the original module's forward) ------------------
    out_mean, out_state = rkn_single_cell_forward(x_seq[0], state0, prep)
    out_mean = jax.block_until_ready(out_mean)
    out_state = jax.block_until_ready(out_state)
    ref_mean, ref_state = rkn_reference(x_seq[0], state0, params)
    np.testing.assert_allclose(np.asarray(out_mean), np.asarray(ref_mean),
                               rtol=1e-2, atol=1e-2)
    np.testing.assert_allclose(np.asarray(out_state), np.asarray(ref_state),
                               rtol=1e-2, atol=1e-2)

    # ---- T-step rollout in ONE pallas_call (chunked time grid) ----------------
    seq_out = jax.block_until_ready(rkn_sequence_forward(x_seq, state0, prep))
    ref_seq = rkn_reference_sequence(x_seq, state0, params)
    np.testing.assert_allclose(np.asarray(seq_out), np.asarray(ref_seq),
                               rtol=1e-2, atol=1e-2)

    print("KERNEL_OK")
</pallas_src>

<mosaic_0001>
module attributes {stable_mosaic.version = 11 : i64} {
  func.func @rkn_chunk_kernel(%arg0: i32, %arg1: memref<8x8xf32, #tpu.memory_space<vmem>>, %arg2: memref<8x8xf32, #tpu.memory_space<vmem>>, %arg3: memref<5x8x8xf32, #tpu.memory_space<vmem>>, %arg4: memref<8x8xf32, #tpu.memory_space<vmem>>, %arg5: memref<8x8xf32, #tpu.memory_space<vmem>>, %arg6: memref<1x8xf32, #tpu.memory_space<vmem>>, %arg7: memref<8x512xf32, #tpu.memory_space<vmem>>, %arg8: memref<8x128xf32, #tpu.memory_space<vmem>>, %arg9: memref<128x8xf32, #tpu.memory_space<vmem>>, %arg10: memref<1x8xf32, #tpu.memory_space<vmem>>, %arg11: memref<1x8xf32, #tpu.memory_space<vmem>>, %arg12: memref<8x40xf32, #tpu.memory_space<vmem>>, %arg13: memref<5x8x8xf32, #tpu.memory_space<vmem>>) attributes {dimension_semantics = [#tpu.dimension_semantics<arbitrary>], iteration_bounds = array<i64: 1>, scalar_prefetch = 0 : i64, scratch_operands = 1 : i64, tpu.core_type = #tpu.core_type<tc>, window_params = [{transform_indices = @transform_0, window_bounds = array<i64: 8, 8>}, {transform_indices = @transform_1, window_bounds = array<i64: 8, 8>}, {pipeline_mode = #tpu.pipeline_mode<synchronous>, transform_indices = @transform_2, window_bounds = array<i64: 5, 8, 8>}, {pipeline_mode = #tpu.pipeline_mode<synchronous>, transform_indices = @transform_3, window_bounds = array<i64: 8, 8>}, {pipeline_mode = #tpu.pipeline_mode<synchronous>, transform_indices = @transform_4, window_bounds = array<i64: 8, 8>}, {pipeline_mode = #tpu.pipeline_mode<synchronous>, transform_indices = @transform_5, window_bounds = array<i64: 1, 8>}, {pipeline_mode = #tpu.pipeline_mode<synchronous>, transform_indices = @transform_6, window_bounds = array<i64: 8, 512>}, {pipeline_mode = #tpu.pipeline_mode<synchronous>, transform_indices = @transform_7, window_bounds = array<i64: 8, 128>}, {pipeline_mode = #tpu.pipeline_mode<synchronous>, transform_indices = @transform_8, window_bounds = array<i64: 128, 8>}, {pipeline_mode = #tpu.pipeline_mode<synchronous>, transform_indices = @transform_9, window_bounds = array<i64: 1, 8>}, {pipeline_mode = #tpu.pipeline_mode<synchronous>, transform_indices = @transform_10, window_bounds = array<i64: 1, 8>}, {transform_indices = @transform_11, window_bounds = array<i64: 8, 40>}]} {
    %c0_i32 = arith.constant 0 : i32
    %0 = arith.cmpi eq, %arg0, %c0_i32 : i32
    %1 = arith.extui %0 : i1 to i32
    %c0_i32_0 = arith.constant 0 : i32
    %2 = arith.cmpi ne, %1, %c0_i32_0 : i32
    scf.if %2 {
      %c0_56 = arith.constant 0 : index
      %c0_57 = arith.constant 0 : index
      %c0_58 = arith.constant 0 : index
      %134 = vector.load %arg3[%c0_56, %c0_57, %c0_58] : memref<5x8x8xf32, #tpu.memory_space<vmem>>, vector<5x8x8xf32>
      %c0_59 = arith.constant 0 : index
      %c0_60 = arith.constant 0 : index
      %c0_61 = arith.constant 0 : index
      %135 = vector.load %arg13[%c0_59, %c0_60, %c0_61] : memref<5x8x8xf32, #tpu.memory_space<vmem>>, vector<5x8x8xf32>
      tpu.vector_store %arg13[%c0_59, %c0_60, %c0_61], %134 {strides = array<i32>} : memref<5x8x8xf32, #tpu.memory_space<vmem>>, vector<5x8x8xf32>,
    } else {
    }
    %c0 = arith.constant 0 : index
    %c0_1 = arith.constant 0 : index
    %3 = vector.load %arg4[%c0, %c0_1] : memref<8x8xf32, #tpu.memory_space<vmem>>, vector<8x8xf32>
    %c0_2 = arith.constant 0 : index
    %c0_3 = arith.constant 0 : index
    %4 = vector.load %arg5[%c0_2, %c0_3] : memref<8x8xf32, #tpu.memory_space<vmem>>, vector<8x8xf32>
    %c0_4 = arith.constant 0 : index
    %c0_5 = arith.constant 0 : index
    %5 = vector.load %arg6[%c0_4, %c0_5] : memref<1x8xf32, #tpu.memory_space<vmem>>, vector<1x8xf32>
    %c0_6 = arith.constant 0 : index
    %c0_7 = arith.constant 0 : index
    %6 = vector.load %arg7[%c0_6, %c0_7] : memref<8x512xf32, #tpu.memory_space<vmem>>, vector<8x512xf32>
    %c0_8 = arith.constant 0 : index
    %c0_9 = arith.constant 0 : index
    %7 = vector.load %arg8[%c0_8, %c0_9] : memref<8x128xf32, #tpu.memory_space<vmem>>, vector<8x128xf32>
    %c0_10 = arith.constant 0 : index
    %c0_11 = arith.constant 0 : index
    %8 = vector.load %arg9[%c0_10, %c0_11] : memref<128x8xf32, #tpu.memory_space<vmem>>, vector<128x8xf32>
    %c0_12 = arith.constant 0 : index
    %c0_13 = arith.constant 0 : index
    %9 = vector.load %arg10[%c0_12, %c0_13] : memref<1x8xf32, #tpu.memory_space<vmem>>, vector<1x8xf32>
    %c0_14 = arith.constant 0 : index
    %c0_15 = arith.constant 0 : index
    %10 = vector.load %arg11[%c0_14, %c0_15] : memref<1x8xf32, #tpu.memory_space<vmem>>, vector<1x8xf32>
    %c0_16 = arith.constant 0 : index
    %c0_17 = arith.constant 0 : index
    %c0_18 = arith.constant 0 : index
    %11 = vector.load %arg13[%c0_16, %c0_17, %c0_18] : memref<5x8x8xf32, #tpu.memory_space<vmem>>, vector<1x8x8xf32>
    %12 = vector.shape_cast %11 : vector<1x8x8xf32> to vector<8x8xf32>
    %c1 = arith.constant 1 : index
    %c0_19 = arith.constant 0 : index
    %c0_20 = arith.constant 0 : index
    %13 = vector.load %arg13[%c1, %c0_19, %c0_20] : memref<5x8x8xf32, #tpu.memory_space<vmem>>, vector<1x8x8xf32>
    %14 = vector.shape_cast %13 : vector<1x8x8xf32> to vector<8x8xf32>
    %c2 = arith.constant 2 : index
    %c0_21 = arith.constant 0 : index
    %c0_22 = arith.constant 0 : index
    %15 = vector.load %arg13[%c2, %c0_21, %c0_22] : memref<5x8x8xf32, #tpu.memory_space<vmem>>, vector<1x8x8xf32>
    %16 = vector.shape_cast %15 : vector<1x8x8xf32> to vector<8x8xf32>
    %c3 = arith.constant 3 : index
    %c0_23 = arith.constant 0 : index
    %c0_24 = arith.constant 0 : index
    %17 = vector.load %arg13[%c3, %c0_23, %c0_24] : memref<5x8x8xf32, #tpu.memory_space<vmem>>, vector<1x8x8xf32>
    %18 = vector.shape_cast %17 : vector<1x8x8xf32> to vector<8x8xf32>
    %c4 = arith.constant 4 : index
    %c0_25 = arith.constant 0 : index
    %c0_26 = arith.constant 0 : index
    %19 = vector.load %arg13[%c4, %c0_25, %c0_26] : memref<5x8x8xf32, #tpu.memory_space<vmem>>, vector<1x8x8xf32>
    %20 = vector.shape_cast %19 : vector<1x8x8xf32> to vector<8x8xf32>
    %c0_i32_27 = arith.constant 0 : i32
    %c8_i32 = arith.constant 8 : i32
    %21 = arith.muli %c0_i32_27, %c8_i32 : i32
    %22 = tpu.assume_multiple %21, 8 : i32
    %23 = arith.index_cast %22 : i32 to index
    %c0_28 = arith.constant 0 : index
    %24 = vector.load %arg1[%23, %c0_28] : memref<8x8xf32, #tpu.memory_space<vmem>>, vector<8x8xf32>
    %25 = arith.index_cast %22 : i32 to index
    %c0_29 = arith.constant 0 : index
    %26 = vector.load %arg2[%25, %c0_29] : memref<8x8xf32, #tpu.memory_space<vmem>>, vector<8x8xf32>
    %cst = arith.constant dense<0.000000e+00> : vector<8x8xf32>
    %27 = tpu.matmul %12, %3, %cst {dimension_numbers = #tpu.dot_dimension_numbers<[1], [0], [0], [1], [0, 0, 1, 1], [], []>} : vector<8x8xf32>, vector<8x8xf32>, vector<8x8xf32> -> vector<8x8xf32>
    %cst_30 = arith.constant dense<0.000000e+00> : vector<8x8xf32>
    %28 = tpu.matmul %14, %4, %cst_30 {dimension_numbers = #tpu.dot_dimension_numbers<[1], [0], [0], [1], [0, 0, 1, 1], [], []>} : vector<8x8xf32>, vector<8x8xf32>, vector<8x8xf32> -> vector<8x8xf32>
    %29 = arith.addf %27, %28 : vector<8x8xf32>
    %30 = vector.broadcast %5 : vector<1x8xf32> to vector<8x8xf32>
    %31 = arith.addf %29, %30 : vector<8x8xf32>
    %cst_31 = arith.constant dense<0xFF800000> : vector<8xf32>
    %32 = vector.multi_reduction <maximumf>, %31, %cst_31 [1] : vector<8x8xf32> to vector<8xf32>
    %33 = vector.shape_cast %32 : vector<8xf32> to vector<8x1xf32>
    %34 = vector.broadcast %33 : vector<8x1xf32> to vector<8x8xf32>
    %35 = arith.subf %31, %34 : vector<8x8xf32>
    %36 = math.exp %35 : vector<8x8xf32>
    %cst_32 = arith.constant dense<0.000000e+00> : vector<8xf32>
    %37 = vector.multi_reduction <add>, %36, %cst_32 [1] : vector<8x8xf32> to vector<8xf32>
    %38 = vector.shape_cast %37 : vector<8xf32> to vector<8x1xf32>
    %39 = vector.broadcast %38 : vector<8x1xf32> to vector<8x8xf32>
    %40 = arith.divf %36, %39 : vector<8x8xf32>
    %cst_33 = arith.constant dense<0.000000e+00> : vector<8x512xf32>
    %41 = tpu.matmul %40, %6, %cst_33 {dimension_numbers = #tpu.dot_dimension_numbers<[1], [0], [0], [1], [0, 0, 1, 1], [], []>} : vector<8x8xf32>, vector<8x512xf32>, vector<8x512xf32> -> vector<8x512xf32>
    %42 = vector.extract_strided_slice %41 {offsets = [0, 0], sizes = [8, 128], strides = [1, 1]} : vector<8x512xf32> to vector<8x128xf32>
    %43 = vector.extract_strided_slice %41 {offsets = [0, 128], sizes = [8, 128], strides = [1, 1]} : vector<8x512xf32> to vector<8x128xf32>
    %44 = vector.extract_strided_slice %41 {offsets = [0, 256], sizes = [8, 128], strides = [1, 1]} : vector<8x512xf32> to vector<8x128xf32>
    %45 = vector.extract_strided_slice %41 {offsets = [0, 384], sizes = [8, 128], strides = [1, 1]} : vector<8x512xf32> to vector<8x128xf32>
    %46 = tpu.concatenate %12, %14, %16, %18, %20 in 0 : vector<8x8xf32>, vector<8x8xf32>, vector<8x8xf32>, vector<8x8xf32>, vector<8x8xf32> -> vector<40x8xf32>
    %cst_34 = arith.constant dense<0.000000e+00> : vector<40x128xf32>
    %47 = tpu.matmul %46, %7, %cst_34 {dimension_numbers = #tpu.dot_dimension_numbers<[1], [0], [0], [1], [0, 0, 1, 1], [], []>} : vector<40x8xf32>, vector<8x128xf32>, vector<40x128xf32> -> vector<40x128xf32>
    %48 = vector.extract_strided_slice %47 {offsets = [0, 0], sizes = [8, 128], strides = [1, 1]} : vector<40x128xf32> to vector<8x128xf32>
    %49 = vector.extract_strided_slice %47 {offsets = [8, 0], sizes = [8, 128], strides = [1, 1]} : vector<40x128xf32> to vector<8x128xf32>
    %50 = vector.extract_strided_slice %47 {offsets = [16, 0], sizes = [8, 128], strides = [1, 1]} : vector<40x128xf32> to vector<8x128xf32>
    %51 = vector.extract_strided_slice %47 {offsets = [24, 0], sizes = [8, 128], strides = [1, 1]} : vector<40x128xf32> to vector<8x128xf32>
    %52 = vector.extract_strided_slice %47 {offsets = [32, 0], sizes = [8, 128], strides = [1, 1]} : vector<40x128xf32> to vector<8x128xf32>
    %53 = arith.mulf %42, %48 : vector<8x128xf32>
    %54 = arith.mulf %43, %49 : vector<8x128xf32>
    %55 = arith.addf %53, %54 : vector<8x128xf32>
    %56 = arith.mulf %44, %48 : vector<8x128xf32>
    %57 = arith.mulf %45, %49 : vector<8x128xf32>
    %58 = arith.addf %56, %57 : vector<8x128xf32>
    %59 = arith.mulf %42, %42 : vector<8x128xf32>
    %60 = arith.mulf %59, %50 : vector<8x128xf32>
    %cst_35 = arith.constant 2.000000e+00 : f32
    %61 = vector.broadcast %cst_35 : f32 to vector<8x128xf32>
    %62 = arith.mulf %61, %42 : vector<8x128xf32>
    %63 = arith.mulf %62, %43 : vector<8x128xf32>
    %64 = arith.mulf %63, %52 : vector<8x128xf32>
    %65 = arith.addf %60, %64 : vector<8x128xf32>
    %66 = arith.mulf %43, %43 : vector<8x128xf32>
    %67 = arith.mulf %66, %51 : vector<8x128xf32>
    %68 = arith.addf %65, %67 : vector<8x128xf32>
    %69 = arith.mulf %44, %44 : vector<8x128xf32>
    %70 = arith.mulf %69, %50 : vector<8x128xf32>
    %cst_36 = arith.constant 2.000000e+00 : f32
    %71 = vector.broadcast %cst_36 : f32 to vector<8x128xf32>
    %72 = arith.mulf %71, %44 : vector<8x128xf32>
    %73 = arith.mulf %72, %45 : vector<8x128xf32>
    %74 = arith.mulf %73, %52 : vector<8x128xf32>
    %75 = arith.addf %70, %74 : vector<8x128xf32>
    %76 = arith.mulf %45, %45 : vector<8x128xf32>
    %77 = arith.mulf %76, %51 : vector<8x128xf32>
    %78 = arith.addf %75, %77 : vector<8x128xf32>
    %79 = arith.mulf %44, %42 : vector<8x128xf32>
    %80 = arith.mulf %79, %50 : vector<8x128xf32>
    %81 = arith.mulf %45, %42 : vector<8x128xf32>
    %82 = arith.mulf %44, %43 : vector<8x128xf32>
    %83 = arith.addf %81, %82 : vector<8x128xf32>
    %84 = arith.mulf %83, %52 : vector<8x128xf32>
    %85 = arith.addf %80, %84 : vector<8x128xf32>
    %86 = arith.mulf %45, %43 : vector<8x128xf32>
    %87 = arith.mulf %86, %51 : vector<8x128xf32>
    %88 = arith.addf %85, %87 : vector<8x128xf32>
    %89 = tpu.concatenate %55, %58, %68, %78, %88 in 0 : vector<8x128xf32>, vector<8x128xf32>, vector<8x128xf32>, vector<8x128xf32>, vector<8x128xf32> -> vector<40x128xf32>
    %cst_37 = arith.constant dense<0.000000e+00> : vector<40x8xf32>
    %90 = tpu.matmul %89, %8, %cst_37 {dimension_numbers = #tpu.dot_dimension_numbers<[1], [0], [0], [1], [0, 0, 1, 1], [], []>} : vector<40x128xf32>, vector<128x8xf32>, vector<40x8xf32> -> vector<40x8xf32>
    %91 = vector.extract_strided_slice %90 {offsets = [0, 0], sizes = [8, 8], strides = [1, 1]} : vector<40x8xf32> to vector<8x8xf32>
    %92 = vector.extract_strided_slice %90 {offsets = [8, 0], sizes = [8, 8], strides = [1, 1]} : vector<40x8xf32> to vector<8x8xf32>
    %93 = vector.extract_strided_slice %90 {offsets = [16, 0], sizes = [8, 8], strides = [1, 1]} : vector<40x8xf32> to vector<8x8xf32>
    %94 = vector.broadcast %9 : vector<1x8xf32> to vector<8x8xf32>
    %95 = arith.addf %93, %94 : vector<8x8xf32>
    %96 = vector.extract_strided_slice %90 {offsets = [24, 0], sizes = [8, 8], strides = [1, 1]} : vector<40x8xf32> to vector<8x8xf32>
    %97 = vector.broadcast %10 : vector<1x8xf32> to vector<8x8xf32>
    %98 = arith.addf %96, %97 : vector<8x8xf32>
    %99 = vector.extract_strided_slice %90 {offsets = [32, 0], sizes = [8, 8], strides = [1, 1]} : vector<40x8xf32> to vector<8x8xf32>
    %100 = arith.addf %95, %26 : vector<8x8xf32>
    %cst_38 = arith.constant 1.000000e+00 : f32
    %101 = vector.broadcast %cst_38 : f32 to vector<8x8xf32>
    %102 = arith.divf %101, %100 : vector<8x8xf32>
    %103 = arith.mulf %95, %102 : vector<8x8xf32>
    %104 = arith.mulf %99, %102 : vector<8x8xf32>
    %105 = arith.subf %24, %91 : vector<8x8xf32>
    %106 = arith.mulf %103, %105 : vector<8x8xf32>
    %107 = arith.addf %91, %106 : vector<8x8xf32>
    %108 = arith.mulf %104, %105 : vector<8x8xf32>
    %109 = arith.addf %92, %108 : vector<8x8xf32>
    %cst_39 = arith.constant 1.000000e+00 : f32
    %110 = vector.broadcast %cst_39 : f32 to vector<8x8xf32>
    %111 = arith.subf %110, %103 : vector<8x8xf32>
    %112 = arith.mulf %111, %95 : vector<8x8xf32>
    %113 = arith.mulf %104, %99 : vector<8x8xf32>
    %114 = arith.subf %98, %113 : vector<8x8xf32>
    %115 = arith.mulf %111, %99 : vector<8x8xf32>
    %116 = tpu.concatenate %107, %109, %112, %114, %115 in 1 : vector<8x8xf32>, vector<8x8xf32>, vector<8x8xf32>, vector<8x8xf32>, vector<8x8xf32> -> vector<8x40xf32>
    %117 = arith.index_cast %22 : i32 to index
    %c0_40 = arith.constant 0 : index
    %118 = vector.load %arg12[%117, %c0_40] : memref<8x40xf32, #tpu.memory_space<vmem>>, vector<8x40xf32>
    tpu.vector_store %arg12[%117, %c0_40], %116 {strides = array<i32>} : memref<8x40xf32, #tpu.memory_space<vmem>>, vector<8x40xf32>,
    %c1_i32 = arith.constant 1 : i32
    %c0_41 = arith.constant 0 : index
    %c0_42 = arith.constant 0 : index
    %c0_43 = arith.constant 0 : index
    %119 = vector.load %arg13[%c0_41, %c0_42, %c0_43] : memref<5x8x8xf32, #tpu.memory_space<vmem>>, vector<1x8x8xf32>
    %120 = vector.shape_cast %119 : vector<1x8x8xf32> to vector<8x8xf32>
    %121 = vector.shape_cast %107 : vector<8x8xf32> to vector<1x8x8xf32>
    tpu.vector_store %arg13[%c0_41, %c0_42, %c0_43], %121 {strides = array<i32>} : memref<5x8x8xf32, #tpu.memory_space<vmem>>, vector<1x8x8xf32>,
    %c1_44 = arith.constant 1 : index
    %c0_45 = arith.constant 0 : index
    %c0_46 = arith.constant 0 : index
    %122 = vector.load %arg13[%c1_44, %c0_45, %c0_46] : memref<5x8x8xf32, #tpu.memory_space<vmem>>, vector<1x8x8xf32>
    %123 = vector.shape_cast %122 : vector<1x8x8xf32> to vector<8x8xf32>
    %124 = vector.shape_cast %109 : vector<8x8xf32> to vector<1x8x8xf32>
    tpu.vector_store %arg13[%c1_44, %c0_45, %c0_46], %124 {strides = array<i32>} : memref<5x8x8xf32, #tpu.memory_space<vmem>>, vector<1x8x8xf32>,
    %c2_47 = arith.constant 2 : index
    %c0_48 = arith.constant 0 : index
    %c0_49 = arith.constant 0 : index
    %125 = vector.load %arg13[%c2_47, %c0_48, %c0_49] : memref<5x8x8xf32, #tpu.memory_space<vmem>>, vector<1x8x8xf32>
    %126 = vector.shape_cast %125 : vector<1x8x8xf32> to vector<8x8xf32>
    %127 = vector.shape_cast %112 : vector<8x8xf32> to vector<1x8x8xf32>
    tpu.vector_store %arg13[%c2_47, %c0_48, %c0_49], %127 {strides = array<i32>} : memref<5x8x8xf32, #tpu.memory_space<vmem>>, vector<1x8x8xf32>,
    %c3_50 = arith.constant 3 : index
    %c0_51 = arith.constant 0 : index
    %c0_52 = arith.constant 0 : index
    %128 = vector.load %arg13[%c3_50, %c0_51, %c0_52] : memref<5x8x8xf32, #tpu.memory_space<vmem>>, vector<1x8x8xf32>
    %129 = vector.shape_cast %128 : vector<1x8x8xf32> to vector<8x8xf32>
    %130 = vector.shape_cast %114 : vector<8x8xf32> to vector<1x8x8xf32>
    tpu.vector_store %arg13[%c3_50, %c0_51, %c0_52], %130 {strides = array<i32>} : memref<5x8x8xf32, #tpu.memory_space<vmem>>, vector<1x8x8xf32>,
    %c4_53 = arith.constant 4 : index
    %c0_54 = arith.constant 0 : index
    %c0_55 = arith.constant 0 : index
    %131 = vector.load %arg13[%c4_53, %c0_54, %c0_55] : memref<5x8x8xf32, #tpu.memory_space<vmem>>, vector<1x8x8xf32>
    %132 = vector.shape_cast %131 : vector<1x8x8xf32> to vector<8x8xf32>
    %133 = vector.shape_cast %115 : vector<8x8xf32> to vector<1x8x8xf32>
    tpu.vector_store %arg13[%c4_53, %c0_54, %c0_55], %133 {strides = array<i32>} : memref<5x8x8xf32, #tpu.memory_space<vmem>>, vector<1x8x8xf32>,
    return
  }
  func.func @transform_0(%arg0: i32) -> (i32, i32) {
    %c0_i32 = arith.constant 0 : i32
    %c0_i32_0 = arith.constant 0 : i32
    return %arg0, %c0_i32 : i32, i32
  }
  func.func @transform_1(%arg0: i32) -> (i32, i32) {
    %c0_i32 = arith.constant 0 : i32
    %c0_i32_0 = arith.constant 0 : i32
    return %arg0, %c0_i32 : i32, i32
  }
  func.func @transform_2(%arg0: i32) -> (i32, i32, i32) {
    %c0_i32 = arith.constant 0 : i32
    %c0_i32_0 = arith.constant 0 : i32
    %c0_i32_1 = arith.constant 0 : i32
    %c0_i32_2 = arith.constant 0 : i32
    return %c0_i32, %c0_i32_0, %c0_i32_1 : i32, i32, i32
  }
  func.func @transform_3(%arg0: i32) -> (i32, i32) {
    %c0_i32 = arith.constant 0 : i32
    %c0_i32_0 = arith.constant 0 : i32
    %c0_i32_1 = arith.constant 0 : i32
    return %c0_i32, %c0_i32_0 : i32, i32
  }
  func.func @transform_4(%arg0: i32) -> (i32, i32) {
    %c0_i32 = arith.constant 0 : i32
    %c0_i32_0 = arith.constant 0 : i32
    %c0_i32_1 = arith.constant 0 : i32
    return %c0_i32, %c0_i32_0 : i32, i32
  }
  func.func @transform_5(%arg0: i32) -> (i32, i32) {
    %c0_i32 = arith.constant 0 : i32
    %c0_i32_0 = arith.constant 0 : i32
    %c0_i32_1 = arith.constant 0 : i32
    return %c0_i32, %c0_i32_0 : i32, i32
  }
  func.func @transform_6(%arg0: i32) -> (i32, i32) {
    %c0_i32 = arith.constant 0 : i32
    %c0_i32_0 = arith.constant 0 : i32
    %c0_i32_1 = arith.constant 0 : i32
    return %c0_i32, %c0_i32_0 : i32, i32
  }
  func.func @transform_7(%arg0: i32) -> (i32, i32) {
    %c0_i32 = arith.constant 0 : i32
    %c0_i32_0 = arith.constant 0 : i32
    %c0_i32_1 = arith.constant 0 : i32
    return %c0_i32, %c0_i32_0 : i32, i32
  }
  func.func @transform_8(%arg0: i32) -> (i32, i32) {
    %c0_i32 = arith.constant 0 : i32
    %c0_i32_0 = arith.constant 0 : i32
    %c0_i32_1 = arith.constant 0 : i32
    return %c0_i32, %c0_i32_0 : i32, i32
  }
  func.func @transform_9(%arg0: i32) -> (i32, i32) {
    %c0_i32 = arith.constant 0 : i32
    %c0_i32_0 = arith.constant 0 : i32
    %c0_i32_1 = arith.constant 0 : i32
    return %c0_i32, %c0_i32_0 : i32, i32
  }
  func.func @transform_10(%arg0: i32) -> (i32, i32) {
    %c0_i32 = arith.constant 0 : i32
    %c0_i32_0 = arith.constant 0 : i32
    %c0_i32_1 = arith.constant 0 : i32
    return %c0_i32, %c0_i32_0 : i32, i32
  }
  func.func @transform_11(%arg0: i32) -> (i32, i32) {
    %c0_i32 = arith.constant 0 : i32
    %c0_i32_0 = arith.constant 0 : i32
    return %arg0, %c0_i32 : i32, i32
  }
}

</mosaic_0001>

<llo_original>
// kernel: _rkn_sequence_impl.1
$region0: #{_rkn_sequence_impl.1}
  #allocation0 [shape = 'u32[]', space=smem, size = 0x4, offset = 0x4, fixed_abs, tag = 'smem constant byte address 0x4 - core index']
  #allocation1 [shape = 'u32[72,128]{1,0:T(1,128)}', space=vmem, size = 0x9000, scoped, tag = 'internal scratch']
  #allocation2 [shape = 'f32[5,8,8]{2,1,0:T(8,128)}', space=vmem, size = 0x5000, scoped, tag = 'scratch operand']
  %s0 = inlined_call_operand.vmem [shape: f32[8,8], index: 0, kind: input, shape index: {}]
  %s1 = inlined_call_operand.vmem [shape: f32[8,8], index: 1, kind: input, shape index: {}]
  %s2 = inlined_call_operand.vmem [shape: f32[5,8,8], index: 2, kind: input, shape index: {}]
  %s3 = inlined_call_operand.vmem [shape: f32[8,8], index: 3, kind: input, shape index: {}]
  %s4 = inlined_call_operand.vmem [shape: f32[8,8], index: 4, kind: input, shape index: {}]
  %s5 = inlined_call_operand.vmem [shape: f32[1,8], index: 5, kind: input, shape index: {}]
  %s6 = inlined_call_operand.vmem [shape: f32[8,512], index: 6, kind: input, shape index: {}]
  %s7 = inlined_call_operand.vmem [shape: f32[8,128], index: 7, kind: input, shape index: {}]
  %s8 = inlined_call_operand.vmem [shape: f32[128,8], index: 8, kind: input, shape index: {}]
  %s9 = inlined_call_operand.vmem [shape: f32[1,8], index: 9, kind: input, shape index: {}]
  %s10 = inlined_call_operand.vmem [shape: f32[1,8], index: 10, kind: input, shape index: {}]
  %s11 = inlined_call_operand.hbm [shape: f32[8,40], index: 11, kind: output, shape index: {}]
  %s12 = sld [smem:[#allocation0]]
  $region58: #{_rkn_sequence_impl.1} parent=0
    _
  %s14 = ssub.s32 1, %s12
  %s15 = scalar_select 0, %s14, %s12
  $region1: #{_rkn_sequence_impl.1} parent=0
    #allocation3 [shape = 'u8[4096]{0}', space=vmem, size = 0x1000, scoped, tag = 'output window, operand 0, single buffered']
    #allocation4 [shape = 's32[1]{0}', space=sflag, size = 0x4, scoped, tag = 'scoped memory for _rkn_sequence_impl.1']
    %16 = vsyncpa [#allocation4], 0
    // Predicated region
    $region2: #{_rkn_sequence_impl.1} parent=1 // pred_check
      _
    $region3: #{_rkn_sequence_impl.1} parent=1 // pred_check_branch
      %18 = sbr.rel (0) target = $region5
    $region4: #{_rkn_sequence_impl.1} parent=1 // pred_region
      _
    $region5: #{_rkn_sequence_impl.1} parent=1 // pred_fallthru
      _
    // Predicated region
    $region6: #{_rkn_sequence_impl.1} parent=1 // pred_check
      _
    $region7: #{_rkn_sequence_impl.1} parent=1 // pred_check_branch
      %20 = sbr.rel (0) target = $region9
    $region8: #{_rkn_sequence_impl.1} parent=1 // pred_region
      _
    $region9: #{_rkn_sequence_impl.1} parent=1 // pred_fallthru
      _
    // Predicated region
    $region10: #{_rkn_sequence_impl.1} parent=1 // pred_check
      _
    $region11: #{_rkn_sequence_impl.1} parent=1 // pred_check_branch
      %22 = sbr.rel (0) target = $region13
    $region12: #{_rkn_sequence_impl.1} parent=1 // pred_region
      _
    $region13: #{_rkn_sequence_impl.1} parent=1 // pred_fallthru
      _
    // Predicated region
    $region14: #{_rkn_sequence_impl.1} parent=1 // pred_check
      _
    $region15: #{_rkn_sequence_impl.1} parent=1 // pred_check_branch
      %24 = sbr.rel (0) target = $region17
    $region16: #{_rkn_sequence_impl.1} parent=1 // pred_region
      _
    $region17: #{_rkn_sequence_impl.1} parent=1 // pred_fallthru
      _
    // Predicated region
    $region18: #{_rkn_sequence_impl.1} parent=1 // pred_check
      _
    $region19: #{_rkn_sequence_impl.1} parent=1 // pred_check_branch
      %26 = sbr.rel (0) target = $region21
    $region20: #{_rkn_sequence_impl.1} parent=1 // pred_region
      _
    $region21: #{_rkn_sequence_impl.1} parent=1 // pred_fallthru
      _
    // Predicated region
    $region22: #{_rkn_sequence_impl.1} parent=1 // pred_check
      _
    $region23: #{_rkn_sequence_impl.1} parent=1 // pred_check_branch
      %28 = sbr.rel (0) target = $region25
    $region24: #{_rkn_sequence_impl.1} parent=1 // pred_region
      _
    $region25: #{_rkn_sequence_impl.1} parent=1 // pred_fallthru
      _
    // Predicated region
    $region26: #{_rkn_sequence_impl.1} parent=1 // pred_check
      _
    $region27: #{_rkn_sequence_impl.1} parent=1 // pred_check_branch
      %30 = sbr.rel (0) target = $region29
    $region28: #{_rkn_sequence_impl.1} parent=1 // pred_region
      _
    $region29: #{_rkn_sequence_impl.1} parent=1 // pred_fallthru
      _
    // Predicated region
    $region30: #{_rkn_sequence_impl.1} parent=1 // pred_check
      _
    $region31: #{_rkn_sequence_impl.1} parent=1 // pred_check_branch
      %32 = sbr.rel (0) target = $region33
    $region32: #{_rkn_sequence_impl.1} parent=1 // pred_region
      _
    $region33: #{_rkn_sequence_impl.1} parent=1 // pred_fallthru
      _
    // Predicated region
    $region34: #{_rkn_sequence_impl.1} parent=1 // pred_check
      _
    $region35: #{_rkn_sequence_impl.1} parent=1 // pred_check_branch
      %34 = sbr.rel (0) target = $region37
    $region36: #{_rkn_sequence_impl.1} parent=1 // pred_region
      _
    $region37: #{_rkn_sequence_impl.1} parent=1 // pred_fallthru
      _
    // Predicated region
    $region38: #{_rkn_sequence_impl.1} parent=1 // pred_check
      _
    $region39: #{_rkn_sequence_impl.1} parent=1 // pred_check_branch
      %36 = sbr.rel (0) target = $region41
    $region40: #{_rkn_sequence_impl.1} parent=1 // pred_region
      _
    $region41: #{_rkn_sequence_impl.1} parent=1 // pred_fallthru
      _
    // Predicated region
    $region42: #{_rkn_sequence_impl.1} parent=1 // pred_check
      _
    $region43: #{_rkn_sequence_impl.1} parent=1 // pred_check_branch
      %38 = sbr.rel (0) target = $region45
    $region44: #{_rkn_sequence_impl.1} parent=1 // pred_region
      _
    $region45: #{_rkn_sequence_impl.1} parent=1 // pred_fallthru
      _
    %p39 = scmp.eq.s32.totalorder 0, 0
    // Predicated region
    $region46: #{_rkn_sequence_impl.1} parent=1 // pred_check
      %p40 = pneg %p39
    $region47: #{_rkn_sequence_impl.1} parent=1 // pred_check_branch
      %42 = sbr.rel (%p40) target = $region49
    $region48: #{_rkn_sequence_impl.1} parent=1 // pred_region
      %v43 = vld [vmem:[%s2] sm:$0xff]
      %v44 = vld [vmem:[%s2 + $0x8] sm:$0xff]
      %v45 = vld [vmem:[%s2 + $0x10] sm:$0xff]
      %v46 = vld [vmem:[%s2 + $0x18] sm:$0xff]
      %v47 = vld [vmem:[%s2 + $0x20] sm:$0xff]
      %vm48 = vcmask 64512
      %49 = vst.msk [vmem:[#allocation2] sm:$0xff] %vm48, %v43
      %50 = vst.msk [vmem:[#allocation2 + $0x8] sm:$0xff] %vm48, %v44
      %51 = vst.msk [vmem:[#allocation2 + $0x10] sm:$0xff] %vm48, %v45
      %52 = vst.msk [vmem:[#allocation2 + $0x18] sm:$0xff] %vm48, %v46
      %53 = vst.msk [vmem:[#allocation2 + $0x20] sm:$0xff] %vm48, %v47
    $region49: #{_rkn_sequence_impl.1} parent=1 // pred_fallthru
      _
    %v54 = vld [vmem:[%s3] sm:$0xff]
    %v55 = vld [vmem:[%s4] sm:$0xff]
    %v56 = vld [vmem:[%s5] sm:$0x1]
    %v57 = vld [vmem:[%s6] sm:$0xff]
    %v58 = vld [vmem:[%s6 + $0x8] sm:$0xff]
    %v59 = vld [vmem:[%s6 + $0x10] sm:$0xff]
    %v60 = vld [vmem:[%s6 + $0x18] sm:$0xff]
    %v61 = vld [vmem:[%s7] sm:$0xff]
    %v62 = vld [vmem:[%s8] sm:$0xff]
    %v63 = vld [vmem:[%s8 + $0x8] sm:$0xff]
    %v64 = vld [vmem:[%s8 + $0x10] sm:$0xff]
    %v65 = vld [vmem:[%s8 + $0x18] sm:$0xff]
    %v66 = vld [vmem:[%s8 + $0x20] sm:$0xff]
    %v67 = vld [vmem:[%s8 + $0x28] sm:$0xff]
    %v68 = vld [vmem:[%s8 + $0x30] sm:$0xff]
    %v69 = vld [vmem:[%s8 + $0x38] sm:$0xff]
    %v70 = vld [vmem:[%s8 + $0x40] sm:$0xff]
    %v71 = vld [vmem:[%s8 + $0x48] sm:$0xff]
    %v72 = vld [vmem:[%s8 + $0x50] sm:$0xff]
    %v73 = vld [vmem:[%s8 + $0x58] sm:$0xff]
    %v74 = vld [vmem:[%s8 + $0x60] sm:$0xff]
    %v75 = vld [vmem:[%s8 + $0x68] sm:$0xff]
    %v76 = vld [vmem:[%s8 + $0x70] sm:$0xff]
    %v77 = vld [vmem:[%s8 + $0x78] sm:$0xff]
    %v78 = vld [vmem:[%s9] sm:$0x1]
    %v79 = vld [vmem:[%s10] sm:$0x1]
    %v80 = vld [vmem:[#allocation2] sm:$0xff]
    %s81 = scalar_lea.vmem [#allocation2], 8
    %v82 = vld [vmem:[%s81] sm:$0xff]
    %s83 = scalar_lea.vmem [#allocation2], 16
    %v84 = vld [vmem:[%s83] sm:$0xff]
    %s85 = scalar_lea.vmem [#allocation2], 24
    %v86 = vld [vmem:[%s85] sm:$0xff]
    %s87 = scalar_lea.vmem [#allocation2], 32
    %v88 = vld [vmem:[%s87] sm:$0xff]
    %v89 = vld [vmem:[%s0] sm:$0xff]
    %v90 = vld [vmem:[%s1] sm:$0xff]
    %vm91 = vcmask 64512
    %v93 = vsel %vm91, %v82, 0
    %95 = vmatpush.msra.mxu0 0.0
    %96 = vmatpush.msra.mxu0 0.0
    %97 = vmatpush.msra.mxu0 0.0
    %98 = vmatpush.msra.mxu0 0.0
    %99 = vmatpush.msra.mxu0 0.0
    %100 = vmatpush.msra.mxu0 0.0
    %101 = vmatpush.msra.mxu0 0.0
    %102 = vmatpush.msra.mxu0 0.0
    %103 = vmatpush.msra.mxu0 0.0
    %104 = vmatpush.msra.mxu0 0.0
    %105 = vmatpush.msra.mxu0 0.0
    %106 = vmatpush.msra.mxu0 0.0
    %107 = vmatpush.msra.mxu0 0.0
    %108 = vmatpush.msra.mxu0 0.0
    %109 = vmatpush.msra.mxu0 0.0
    %110 = vmatpush.msra.mxu0 %v55
    %111 = vmatmul.f32.gmra.mxu0 %v93
    %v112 = vpop.f32.mrf.mxu0
    %v113 = vadd.f32 0.0, %v112
    %114 = vdwg.mxu0
    %v116 = vsel %vm91, %v80, 0
    %118 = vmatpush.msra.mxu0 0.0
    %119 = vmatpush.msra.mxu0 0.0
    %120 = vmatpush.msra.mxu0 0.0
    %121 = vmatpush.msra.mxu0 0.0
    %122 = vmatpush.msra.mxu0 0.0
    %123 = vmatpush.msra.mxu0 0.0
    %124 = vmatpush.msra.mxu0 0.0
    %125 = vmatpush.msra.mxu0 0.0
    %126 = vmatpush.msra.mxu0 0.0
    %127 = vmatpush.msra.mxu0 0.0
    %128 = vmatpush.msra.mxu0 0.0
    %129 = vmatpush.msra.mxu0 0.0
    %130 = vmatpush.msra.mxu0 0.0
    %131 = vmatpush.msra.mxu0 0.0
    %132 = vmatpush.msra.mxu0 0.0
    %133 = vmatpush.msra.mxu0 %v54
    %134 = vmatmul.f32.gmra.mxu0 %v116
    %v135 = vpop.f32.mrf.mxu0
    %v136 = vadd.f32 %v113, %v135
    %137 = vdwg.mxu0
    %v139 = vperm.slane %v56, 0
    %v141 = vadd.f32 %v136, %v139
    %v142 = vsel %vm91, %v141, -inf
    %143 = vmax.xlane.f32.xlu0 %v142
    %v144 = vpop.xlane.xlu0 %143
    %v145 = vsub.f32 %v141, %v144
    %v146 = vmul.f32 %v145, 1.442695
    %v147 = vpow.pop %v146
    %v148 = vsel %vm91, %v147, 0.0
    %149 = vadd.xlane.f32.xlu0 %v148
    %v150 = vpop.xlane.xlu0 %149
    %v151 = vrcp.pop %v150
    %v152 = vmul.f32 %v150, %v151
    %v153 = vsub.f32 1.0, %v152
    %v154 = vmul.f32 %v151, %v153
    %v155 = vadd.f32 %v151, %v154
    %vm156 = vweird.f32 %v150
    %vm157 = vweird.f32 %v151
    %vm158 = vmor %vm156, %vm157
    %v159 = vsel %vm158, %v151, %v155
    %v160 = vand.u32 2147483647, %v150
    %vm161 = vcmp.eq.f32.partialorder %v160, 8.507059e+37
    %v162 = vand.u32 %v150, 2147483648
    %v163 = vor.u32 1.1754944e-38, %v162
    %v164 = vsel %vm161, %v163, %v159
    %v165 = vmul.f32 %v147, %v164
    %v167 = vsel %vm91, %v165, 0
    %169 = vmatpush.msra.mxu0 0.0
    %170 = vmatpush.msra.mxu0 0.0
    %171 = vmatpush.msra.mxu0 0.0
    %172 = vmatpush.msra.mxu0 0.0
    %173 = vmatpush.msra.mxu0 0.0
    %174 = vmatpush.msra.mxu0 0.0
    %175 = vmatpush.msra.mxu0 0.0
    %176 = vmatpush.msra.mxu0 0.0
    %177 = vmatpush.msra.mxu0 0.0
    %178 = vmatpush.msra.mxu0 0.0
    %179 = vmatpush.msra.mxu0 0.0
    %180 = vmatpush.msra.mxu0 0.0
    %181 = vmatpush.msra.mxu0 0.0
    %182 = vmatpush.msra.mxu0 0.0
    %183 = vmatpush.msra.mxu0 0.0
    %184 = vmatpush.msra.mxu0 %v57
    %185 = vmatmul.f32.gmra.mxu0 %v167
    %v186 = vpop.f32.mrf.mxu0
    %v187 = vadd.f32 0.0, %v186
    %188 = vdwg.mxu0
    %189 = vmatpush.msra.mxu0 0.0
    %190 = vmatpush.msra.mxu0 0.0
    %191 = vmatpush.msra.mxu0 0.0
    %192 = vmatpush.msra.mxu0 0.0
    %193 = vmatpush.msra.mxu0 0.0
    %194 = vmatpush.msra.mxu0 0.0
    %195 = vmatpush.msra.mxu0 0.0
    %196 = vmatpush.msra.mxu0 0.0
    %197 = vmatpush.msra.mxu0 0.0
    %198 = vmatpush.msra.mxu0 0.0
    %199 = vmatpush.msra.mxu0 0.0
    %200 = vmatpush.msra.mxu0 0.0
    %201 = vmatpush.msra.mxu0 0.0
    %202 = vmatpush.msra.mxu0 0.0
    %203 = vmatpush.msra.mxu0 0.0
    %204 = vmatpush.msra.mxu0 %v58
    %205 = vmatmul.f32.gmra.mxu0 %v167
    %v206 = vpop.f32.mrf.mxu0
    %v207 = vadd.f32 0.0, %v206
    %208 = vdwg.mxu0
    %209 = vmatpush.msra.mxu0 0.0
    %210 = vmatpush.msra.mxu0 0.0
    %211 = vmatpush.msra.mxu0 0.0
    %212 = vmatpush.msra.mxu0 0.0
    %213 = vmatpush.msra.mxu0 0.0
    %214 = vmatpush.msra.mxu0 0.0
    %215 = vmatpush.msra.mxu0 0.0
    %216 = vmatpush.msra.mxu0 0.0
    %217 = vmatpush.msra.mxu0 0.0
    %218 = vmatpush.msra.mxu0 0.0
    %219 = vmatpush.msra.mxu0 0.0
    %220 = vmatpush.msra.mxu0 0.0
    %221 = vmatpush.msra.mxu0 0.0
    %222 = vmatpush.msra.mxu0 0.0
    %223 = vmatpush.msra.mxu0 0.0
    %224 = vmatpush.msra.mxu0 %v59
    %225 = vmatmul.f32.gmra.mxu0 %v167
    %v226 = vpop.f32.mrf.mxu0
    %v227 = vadd.f32 0.0, %v226
    %228 = vdwg.mxu0
    %229 = vmatpush.msra.mxu0 0.0
    %230 = vmatpush.msra.mxu0 0.0
    %231 = vmatpush.msra.mxu0 0.0
    %232 = vmatpush.msra.mxu0 0.0
    %233 = vmatpush.msra.mxu0 0.0
    %234 = vmatpush.msra.mxu0 0.0
    %235 = vmatpush.msra.mxu0 0.0
    %236 = vmatpush.msra.mxu0 0.0
    %237 = vmatpush.msra.mxu0 0.0
    %238 = vmatpush.msra.mxu0 0.0
    %239 = vmatpush.msra.mxu0 0.0
    %240 = vmatpush.msra.mxu0 0.0
    %241 = vmatpush.msra.mxu0 0.0
    %242 = vmatpush.msra.mxu0 0.0
    %243 = vmatpush.msra.mxu0 0.0
    %244 = vmatpush.msra.mxu0 %v60
    %245 = vmatmul.f32.gmra.mxu0 %v167
    %v246 = vpop.f32.mrf.mxu0
    %v247 = vadd.f32 0.0, %v246
    %248 = vdwg.mxu0
    %v250 = vsel %vm91, %v84, 0
    %v253 = vsel %vm91, %v86, 0
    %v256 = vsel %vm91, %v88, 0
    %258 = vmatpush.msra.mxu0 0.0
    %259 = vmatpush.msra.mxu0 0.0
    %260 = vmatpush.msra.mxu0 0.0
    %261 = vmatpush.msra.mxu0 0.0
    %262 = vmatpush.msra.mxu0 0.0
    %263 = vmatpush.msra.mxu0 0.0
    %264 = vmatpush.msra.mxu0 0.0
    %265 = vmatpush.msra.mxu0 0.0
    %266 = vmatpush.msra.mxu0 0.0
    %267 = vmatpush.msra.mxu0 0.0
    %268 = vmatpush.msra.mxu0 0.0
    %269 = vmatpush.msra.mxu0 0.0
    %270 = vmatpush.msra.mxu0 0.0
    %271 = vmatpush.msra.mxu0 0.0
    %272 = vmatpush.msra.mxu0 0.0
    %273 = vmatpush.msra.mxu0 %v61
    %274 = vmatmul.f32.gmra.mxu0 %v116
    %v275 = vpop.f32.mrf.mxu0
    %v276 = vadd.f32 0.0, %v275
    %277 = vmatmul.f32.gmra.mxu0 %v93
    %v278 = vpop.f32.mrf.mxu0
    %v279 = vadd.f32 0.0, %v278
    %280 = vmatmul.f32.gmra.mxu0 %v250
    %v281 = vpop.f32.mrf.mxu0
    %v282 = vadd.f32 0.0, %v281
    %283 = vmatmul.f32.gmra.mxu0 %v253
    %v284 = vpop.f32.mrf.mxu0
    %v285 = vadd.f32 0.0, %v284
    %286 = vmatmul.f32.gmra.mxu0 %v256
    %v287 = vpop.f32.mrf.mxu0
    %v288 = vadd.f32 0.0, %v287
    %289 = vdwg.mxu0
    %v290 = vmul.f32 %v187, %v276
    %v291 = vmul.f32 %v207, %v279
    %v292 = vadd.f32 %v290, %v291
    %v293 = vmul.f32 %v227, %v276
    %v294 = vmul.f32 %v247, %v279
    %v295 = vadd.f32 %v293, %v294
    %v296 = vmul.f32 %v187, %v187
    %v297 = vmul.f32 %v296, %v282
    %v298 = vmul.f32 %v187, 2.0
    %v299 = vmul.f32 %v298, %v207
    %v300 = vmul.f32 %v299, %v288
    %v301 = vadd.f32 %v297, %v300
    %v302 = vmul.f32 %v207, %v207
    %v303 = vmul.f32 %v302, %v285
    %v304 = vadd.f32 %v301, %v303
    %v305 = vmul.f32 %v227, %v227
    %v306 = vmul.f32 %v305, %v282
    %v307 = vmul.f32 %v227, 2.0
    %v308 = vmul.f32 %v307, %v247
    %v309 = vmul.f32 %v308, %v288
    %v310 = vadd.f32 %v306, %v309
    %v311 = vmul.f32 %v247, %v247
    %v312 = vmul.f32 %v311, %v285
    %v313 = vadd.f32 %v310, %v312
    %v314 = vmul.f32 %v227, %v187
    %v315 = vmul.f32 %v314, %v282
    %v316 = vmul.f32 %v247, %v187
    %v317 = vmul.f32 %v227, %v207
    %v318 = vadd.f32 %v316, %v317
    %v319 = vmul.f32 %v318, %v288
    %v320 = vadd.f32 %v315, %v319
    %v321 = vmul.f32 %v247, %v207
    %v322 = vmul.f32 %v321, %v285
    %v323 = vadd.f32 %v320, %v322
    %324 = vmatpush.msra.mxu0 %v77
    %325 = vmatpush.msra.mxu0 %v76
    %326 = vmatpush.msra.mxu0 %v75
    %327 = vmatpush.msra.mxu0 %v74
    %328 = vmatpush.msra.mxu0 %v73
    %329 = vmatpush.msra.mxu0 %v72
    %330 = vmatpush.msra.mxu0 %v71
    %331 = vmatpush.msra.mxu0 %v70
    %332 = vmatpush.msra.mxu0 %v69
    %333 = vmatpush.msra.mxu0 %v68
    %334 = vmatpush.msra.mxu0 %v67
    %335 = vmatpush.msra.mxu0 %v66
    %336 = vmatpush.msra.mxu0 %v65
    %337 = vmatpush.msra.mxu0 %v64
    %338 = vmatpush.msra.mxu0 %v63
    %339 = vmatpush.msra.mxu0 %v62
    %340 = vmatmul.f32.gmra.mxu0 %v292
    %v341 = vpop.f32.mrf.mxu0
    %v342 = vadd.f32 0.0, %v341
    %343 = vmatmul.f32.gmra.mxu0 %v295
    %v344 = vpop.f32.mrf.mxu0
    %v345 = vadd.f32 0.0, %v344
    %346 = vmatmul.f32.gmra.mxu0 %v304
    %v347 = vpop.f32.mrf.mxu0
    %v348 = vadd.f32 0.0, %v347
    %349 = vmatmul.f32.gmra.mxu0 %v313
    %v350 = vpop.f32.mrf.mxu0
    %v351 = vadd.f32 0.0, %v350
    %352 = vmatmul.f32.gmra.mxu0 %v323
    %v353 = vpop.f32.mrf.mxu0
    %v354 = vadd.f32 0.0, %v353
    %355 = vdwg.mxu0
    %v357 = vperm.slane %v78, 0
    %v359 = vadd.f32 %v348, %v357
    %v361 = vperm.slane %v79, 0
    %v363 = vadd.f32 %v351, %v361
    %v364 = vadd.f32 %v359, %v90
    %v365 = vrcp.pop %v364
    %v366 = vmul.f32 %v364, %v365
    %v367 = vsub.f32 1.0, %v366
    %v368 = vmul.f32 %v365, %v367
    %v369 = vadd.f32 %v365, %v368
    %vm370 = vweird.f32 %v364
    %vm371 = vweird.f32 %v365
    %vm372 = vmor %vm370, %vm371
    %v373 = vsel %vm372, %v365, %v369
    %v374 = vand.u32 2147483647, %v364
    %vm375 = vcmp.eq.f32.partialorder %v374, 8.507059e+37
    %v376 = vand.u32 %v364, 2147483648
    %v377 = vor.u32 1.1754944e-38, %v376
    %v378 = vsel %vm375, %v377, %v373
    %v379 = vmul.f32 1.0, %v378
    %v380 = vmul.f32 %v359, %v379
    %v381 = vmul.f32 %v354, %v379
    %v382 = vsub.f32 %v89, %v342
    %v383 = vmul.f32 %v380, %v382
    %v384 = vadd.f32 %v342, %v383
    %v385 = vmul.f32 %v381, %v382
    %v386 = vadd.f32 %v345, %v385
    %v387 = vsub.f32 1.0, %v380
    %v388 = vmul.f32 %v387, %v359
    %v389 = vmul.f32 %v381, %v354
    %v390 = vsub.f32 %v363, %v389
    %v391 = vmul.f32 %v387, %v354
    %393 = vrot.lane.b32.xlu0 %v386, 8
    %v394 = vpop.permute.xlu0 %393
    %397 = vrot.lane.b32.xlu0 %v388, 16
    %v398 = vpop.permute.xlu0 %397
    %401 = vrot.lane.b32.xlu0 %v390, 24
    %v402 = vpop.permute.xlu0 %401
    %405 = vrot.lane.b32.xlu0 %v391, 32
    %v406 = vpop.permute.xlu0 %405
    %v408 = vsel %vm91, %v384, %v394
    %vm409 = vcmask 130048
    %v410 = vsel %vm409, %v408, %v398
    %vm411 = vcmask 195584
    %v412 = vsel %vm411, %v410, %v402
    %vm413 = vcmask 261120
    %v414 = vsel %vm413, %v412, %v406
    %vm415 = vcmask 326656
    %416 = vst.msk [vmem:[#allocation3] sm:$0xff] %vm415, %v414
    %417 = vst.msk [vmem:[#allocation2] sm:$0xff] %vm91, %v384
    %418 = vst.msk [vmem:[%s81] sm:$0xff] %vm91, %v386
    %419 = vst.msk [vmem:[%s83] sm:$0xff] %vm91, %v388
    %420 = vst.msk [vmem:[%s85] sm:$0xff] %vm91, %v390
    %421 = vst.msk [vmem:[%s87] sm:$0xff] %vm91, %v391
    // Predicated region
    $region50: #{_rkn_sequence_impl.1} parent=1 // pred_check
      _
    $region51: #{_rkn_sequence_impl.1} parent=1 // pred_check_branch
      %423 = sbr.rel (0) target = $region53
    $region52: #{_rkn_sequence_impl.1} parent=1 // pred_region
      %425 = vsyncadd [#allocation4], 0
      %s427 = sshll.u32 [#allocation3], 4
      %s428 = int_to_ptr.vmem [resolvable:$true] %s427
      %s429 = sshll.u32 %s11, 4
      %s430 = int_to_ptr.hbm [resolvable:$true] %s429
      %432 = dma.vmem_to_hbm [thread:$0]  %s428, 128, %s430, [#allocation4]
    $region53: #{_rkn_sequence_impl.1} parent=1 // pred_fallthru
      _
    // Predicated region
    $region54: #{_rkn_sequence_impl.1} parent=1 // pred_check
      _
    $region55: #{_rkn_sequence_impl.1} parent=1 // pred_check_branch
      %434 = sbr.rel (0) target = $region57
    $region56: #{_rkn_sequence_impl.1} parent=1 // pred_region
      %436 = dma.done [#allocation4], 128
    $region57: #{_rkn_sequence_impl.1} parent=1 // pred_fallthru
      _
    %437 = vsyncpa [#allocation4], 1

</llo_original>
